<compile_context>
chip_gen: v7x
topology: tpu7x:2x2x1
jax: 0.10.0
libtpu: 0.0.40
codegen_flags: <defaults>
</compile_context>

<pallas_src>
import jax
import jax.numpy as jnp
from jax import lax
from jax.experimental import pallas as pl
from jax.experimental.pallas import tpu as pltpu

_LANE = 128
_SUBLANE = 8


def _cdiv(a, b):
    return -(-a // b)


def _prod(xs):
    r = 1
    for v in xs:
        r *= int(v)
    return r


def _vmem_budgets():
    """(per-block byte budget, vmem_limit_bytes), generation-aware."""
    vmem_cap = 128 * 1024 * 1024
    try:
        info = pltpu.get_tpu_info()
        vmem_cap = int(getattr(info, "vmem_capacity_bytes", vmem_cap))
    except Exception:  # unknown backend / older jax: use conservative (v7x) numbers
        vmem_cap = 64 * 1024 * 1024
    if vmem_cap <= 64 * 1024 * 1024:            # v7x-class: 64 MiB VMEM per TC
        return 4 * 1024 * 1024, 32 * 1024 * 1024
    return 8 * 1024 * 1024, 64 * 1024 * 1024    # v5e / v6e: 128 MiB VMEM


def _cost(x):
    nbytes = int(x.size) * jnp.dtype(x.dtype).itemsize
    # Pure data movement: one read + one write of the tensor.
    return pl.CostEstimate(flops=0, transcendentals=0, bytes_accessed=2 * nbytes)


def _params(n_grid, vmem_limit):
    return pltpu.CompilerParams(
        dimension_semantics=("parallel",) * n_grid,
        vmem_limit_bytes=vmem_limit)


def _pick_tile(dim, unit, bytes_per_unit, budget):
    """Largest tile (multiple of `unit`, or the full `dim`) whose block fits the
    budget.  Prefers exact divisors of `dim`; otherwise returns a non-divisor
    tile and the caller uses a cdiv grid (ragged last block)."""
    if dim <= unit or dim * bytes_per_unit <= budget:
        return dim
    max_units = max(1, budget // max(1, unit * bytes_per_unit))
    cap = min(max_units * unit, (dim // unit) * unit)
    best_div = 0
    t = unit
    while t <= cap:
        if dim % t == 0:
            best_div = t
        t += unit
    return best_div if best_div else max(cap, unit)


def _tail_in_place_len(dims, n):
    """Length of the maximal trailing run of axes that stay in place & in order."""
    k = 0
    for i in range(1, n + 1):
        if dims[-i] == n - i:
            k = i
        else:
            break
    return k


def _match_channels_last(dims, n):
    """Return k if dims == (*lead_perm, n-k, ..., n-1, n-k-1), else None."""
    for k in range(n - 1, 0, -1):
        c_axis = n - k - 1
        if (dims[-1] == c_axis
                and dims[-(k + 1):-1] == tuple(range(n - k, n))
                and sorted(dims[:-(k + 1)]) == list(range(c_axis))):
            return k
    return None


# --------------------------------------------------------------------------
# Case A: a trailing run of axes stays in place -> pure DMA re-addressing.
# The trailing run is collapsed into a lane-dense 2-D tail; in-place leading
# axes are folded into the block to amortize grid-step overhead.
# --------------------------------------------------------------------------
def _leading_axes_permute(x, dims, k_tail, budget, vmem_limit):
    n = x.ndim
    itemsize = jnp.dtype(x.dtype).itemsize
    L = n - k_tail
    lead_dims = dims[:L]                      # input axis feeding each leading output axis
    T = _prod(x.shape[L:])

    if T % _LANE == 0:
        cols = _LANE                          # lane-dense (rows, 128) tail
    else:                                     # dispatcher guarantees k_tail >= 2 here
        cols = x.shape[-1]
    rows = T // cols

    x2 = x.reshape(x.shape[:L] + (rows, cols))
    out_shape = tuple(x.shape[d] for d in dims)
    out_lead_shape = tuple(x.shape[d] for d in lead_dims)

    r_tile = _pick_tile(rows, _SUBLANE, cols * itemsize, budget)

    # Fold in-place leading axes into the block (amortize per-grid-step cost).
    blk_lead = [1] * L
    if r_tile == rows:
        remaining = budget // max(1, rows * cols * itemsize)
        for j in range(L - 1, -1, -1):
            if remaining < 2:
                break
            if lead_dims[j] != j:             # axis moves -> must stay a unit grid axis
                continue
            take = min(x.shape[j], remaining)
            blk_lead[j] = take
            remaining //= take

    def build_grid():
        g = [_cdiv(x.shape[lead_dims[j]], blk_lead[j]) for j in range(L)]
        g.append(_cdiv(rows, r_tile))
        return tuple(g)

    grid = build_grid()
    if _prod(grid) == 1:                      # keep >=2 blocks for megacore sharding
        if rows >= 2 * _SUBLANE:
            r_tile = _cdiv(_cdiv(rows, 2), _SUBLANE) * _SUBLANE
        else:
            for j in range(L):
                if blk_lead[j] >= 2:
                    blk_lead[j] = _cdiv(blk_lead[j], 2)
                    break
        grid = build_grid()

    inv = {a: j for j, a in enumerate(lead_dims)}   # input axis -> output position

    def in_index_map(*g):
        idx = [0] * (L + 2)
        for a in range(L):
            idx[a] = g[inv[a]]
        idx[L] = g[L]
        return tuple(idx)

    def out_index_map(*g):
        return tuple(g[:L]) + (g[L], 0)

    in_block = tuple(blk_lead[inv[a]] for a in range(L)) + (r_tile, cols)
    out_block = tuple(blk_lead) + (r_tile, cols)

    def kernel(x_ref, o_ref):                 # re-addressing only: identity copy
        o_ref[...] = x_ref[...]

    out2 = pl.pallas_call(
        kernel,
        out_shape=jax.ShapeDtypeStruct(out_lead_shape + (rows, cols), x.dtype),
        grid=grid,
        in_specs=[pl.BlockSpec(in_block, in_index_map)],
        out_specs=pl.BlockSpec(out_block, out_index_map),
        compiler_params=_params(len(grid), vmem_limit),
        cost_estimate=_cost(x),
    )(x2)
    return out2.reshape(out_shape)


# --------------------------------------------------------------------------
# Case B: channels-last family.  Trailing spatial axes collapsed to S, in-place
# leading axes collapsed to a batch axis folded into the block; one small 2-D
# transpose per batch element; lane-dense output under a static gate.
# --------------------------------------------------------------------------
def _channels_last_permute(x, dims, k, budget, vmem_limit):
    n = x.ndim
    itemsize = jnp.dtype(x.dtype).itemsize
    c_axis = n - k - 1
    L = c_axis
    lead_perm = dims[:L]
    C = x.shape[c_axis]
    S = _prod(x.shape[n - k:])
    out_shape = tuple(x.shape[d] for d in dims)

    # Minimal (C, 128) block already way over budget -> bounded generic path.
    if C * min(S, _LANE) * itemsize > 2 * budget:
        return _generic_permute(x, dims, budget, vmem_limit)

    # Maximal suffix of in-place leading axes -> fold into a flat batch axis.
    m = 0
    for i in range(1, L + 1):
        if lead_perm[L - i] == L - i:
            m = i
        else:
            break
    outer_perm = lead_perm[:L - m]
    n_outer = L - m
    outer_out_shape = tuple(x.shape[d] for d in outer_perm)
    Bi = _prod(x.shape[L - m:L])

    x3 = x.reshape(x.shape[:n_outer] + (Bi, C, S))

    s_tile = _pick_tile(S, _LANE, C * itemsize, budget)
    # TODO(synk): for tiny (C, S) with huge batch, a single batched transpose of
    # the whole (b_tile, C, s_tile) block would beat the per-b loop below.
    b_tile = max(1, min(Bi, 128, budget // max(1, C * s_tile * itemsize)))

    def build_grid():
        return outer_out_shape + (_cdiv(Bi, b_tile), _cdiv(S, s_tile))

    grid = build_grid()
    if _prod(grid) == 1:                      # keep >=2 blocks for megacore sharding
        if Bi >= 2:
            b_tile = _cdiv(Bi, 2)
        elif s_tile >= 2 * _LANE:
            s_tile = _cdiv(_cdiv(s_tile, 2), _LANE) * _LANE
        grid = build_grid()

    inv_outer = {a: j for j, a in enumerate(outer_perm)}

    def in_index_map(*g):
        idx = [0] * (n_outer + 3)
        for a in range(n_outer):
            idx[a] = g[inv_outer[a]]
        idx[n_outer] = g[n_outer]             # batch block
        idx[n_outer + 1] = 0                  # full C
        idx[n_outer + 2] = g[n_outer + 1]     # spatial block
        return tuple(idx)

    def out_index_map(*g):
        idx = [0] * (n_outer + 3)
        for j in range(n_outer):
            idx[j] = g[j]
        idx[n_outer] = g[n_outer]
        idx[n_outer + 1] = g[n_outer + 1]
        idx[n_outer + 2] = 0
        return tuple(idx)

    in_spec = pl.BlockSpec((None,) * n_outer + (b_tile, C, s_tile), in_index_map)

    rows_tile = (s_tile * C) // _LANE
    total_rows = (S * C) // _LANE
    # Lane-dense output (unmasked full-lane vst) -- STATIC gate, no try/except.
    lane_dense = (
        C % _LANE != 0
        and C % _SUBLANE == 0
        and s_tile % _LANE == 0
        and S % s_tile == 0
        and (s_tile * C) % _LANE == 0
        and rows_tile % _SUBLANE == 0)
    # TODO(synk): bundle-verify that the (s_tile, C) -> (rows_tile, 128) relayout
    # below does not materialize an extra VMEM copy before widening this gate.

    if lane_dense:
        def per_b(blk):
            return blk.T.reshape(rows_tile, _LANE)
        out_arr_shape = outer_out_shape + (Bi, total_rows, _LANE)
        out_block = (None,) * n_outer + (b_tile, rows_tile, _LANE)
    else:
        def per_b(blk):
            return blk.T
        out_arr_shape = outer_out_shape + (Bi, S, C)
        out_block = (None,) * n_outer + (b_tile, s_tile, C)

    if b_tile <= 8:
        def kernel(x_ref, o_ref):
            for b in range(b_tile):           # small static unroll of 2-D transposes
                o_ref[b] = per_b(x_ref[b])
    else:
        def kernel(x_ref, o_ref):
            def body(b, carry):
                o_ref[b] = per_b(x_ref[b])
                return carry
            lax.fori_loop(0, b_tile, body, 0)

    out3 = pl.pallas_call(
        kernel,
        out_shape=jax.ShapeDtypeStruct(out_arr_shape, x.dtype),
        grid=grid,
        in_specs=[in_spec],
        out_specs=pl.BlockSpec(out_block, out_index_map),
        compiler_params=_params(len(grid), vmem_limit),
        cost_estimate=_cost(x),
    )(x3)
    return out3.reshape(out_shape)


# --------------------------------------------------------------------------
# Case C: tiled generic fallback.  Blocks cover the union of the input's and
# output's two minor axes (tiled to the VMEM budget); everything else is a
# unit grid axis.  Bounded VMEM, pipelined, megacore-shardable.
# --------------------------------------------------------------------------
def _generic_permute(x, dims, budget, vmem_limit):
    # TODO(synk): the in-kernel jnp.transpose here can be rank-3/4 over the
    # blocked axes; decompose into two passes if a shape fails to lower.
    n = x.ndim
    itemsize = jnp.dtype(x.dtype).itemsize
    out_shape = tuple(x.shape[d] for d in dims)
    inv = [0] * n
    for j, a in enumerate(dims):
        inv[a] = j

    last_in = {n - 1} | ({n - 2} if n >= 2 else set())
    last_out = {dims[-1]} | ({dims[-2]} if n >= 2 else set())
    U = sorted(last_in | last_out)            # input axes kept inside each block

    def gran(a):
        if a == n - 1 or a == dims[-1]:
            return _LANE
        if (n >= 2 and a == n - 2) or (n >= 2 and a == dims[-2]):
            return _SUBLANE
        return 1

    tile = {a: x.shape[a] for a in U}

    def blk_bytes():
        return _prod([tile[a] for a in U]) * itemsize

    while blk_bytes() > budget:
        cand = [a for a in U if tile[a] > gran(a) and tile[a] > 1]
        if not cand:
            break
        a = max(cand, key=lambda q: tile[q] / gran(q))
        g = gran(a)
        tile[a] = max(g, (tile[a] // 2) // g * g)

    nblocks = [1] * n
    blk_out = [None] * n
    for j in range(n):
        a = dims[j]
        if a in tile:
            blk_out[j] = tile[a]
            nblocks[j] = _cdiv(out_shape[j], tile[a])
        else:
            blk_out[j] = None                  # size-1, squeezed
            nblocks[j] = out_shape[j]
    grid_axes = [j for j in range(n) if nblocks[j] > 1]
    grid = tuple(nblocks[j] for j in grid_axes) if grid_axes else (1,)
    pos_of = {j: i for i, j in enumerate(grid_axes)}

    def out_index_map(*g):
        return tuple(g[pos_of[j]] if j in pos_of else 0 for j in range(n))

    def in_index_map(*g):
        return tuple(g[pos_of[inv[a]]] if inv[a] in pos_of else 0 for a in range(n))

    in_block = tuple(tile[a] if a in tile else None for a in range(n))
    out_block = tuple(blk_out)

    order_out = [dims[j] for j in range(n) if dims[j] in tile]
    perm = tuple(U.index(a) for a in order_out)

    def kernel(x_ref, o_ref):
        o_ref[...] = jnp.transpose(x_ref[...], perm)

    return pl.pallas_call(
        kernel,
        out_shape=jax.ShapeDtypeStruct(out_shape, x.dtype),
        grid=grid,
        in_specs=[pl.BlockSpec(in_block, in_index_map)],
        out_specs=pl.BlockSpec(out_block, out_index_map),
        compiler_params=_params(len(grid), vmem_limit),
        cost_estimate=_cost(x),
    )(x)


def permute_pallas(x, dims):
    """Pallas TPU equivalent of torch.Tensor.permute(*dims)."""
    dims = tuple(int(d) for d in dims)
    n = x.ndim
    assert sorted(dims) == list(range(n)), "dims must be a permutation of the axes"

    if dims == tuple(range(n)) or n <= 1:
        return x                               # identity permute
    if x.size == 0:
        return jnp.transpose(x, dims)          # nothing to move

    budget, vmem_limit = _vmem_budgets()
    itemsize = jnp.dtype(x.dtype).itemsize

    # Case A: maximal trailing in-place run -> pure DMA re-addressing.
    k_tail = _tail_in_place_len(dims, n)
    if k_tail >= 1:
        T = _prod(x.shape[n - k_tail:])
        cols = _LANE if T % _LANE == 0 else (x.shape[-1] if k_tail >= 2 else 0)
        if cols and cols * _SUBLANE * itemsize <= 2 * budget:
            return _leading_axes_permute(x, dims, k_tail, budget, vmem_limit)

    # Case B: channels-last family (NCHW->NHWC, NCDHW->NDHWC, trailing swap, ...).
    k = _match_channels_last(dims, n)
    if k is not None:
        return _channels_last_permute(x, dims, k, budget, vmem_limit)

    # Case C: bounded tiled generic fallback.
    return _generic_permute(x, dims, budget, vmem_limit)


class Permute:
    """Mirror of csgan/deep/layer.py::Permute (forward: x.permute(*dims))."""

    def __init__(self, dims):
        self.dims = tuple(int(d) for d in dims)

    def __call__(self, x):
        return permute_pallas(x, self.dims)


if __name__ == "__main__":
    key = jax.random.PRNGKey(0)
    k1, k2, k3 = jax.random.split(key, 3)
    x4 = jax.random.normal(k1, (2, 4, 16, 16), dtype=jnp.float32)      # NCHW-ish
    x5 = jax.random.normal(k2, (2, 3, 4, 8, 128), dtype=jnp.float32)   # 5-D
    x2 = jax.random.normal(k3, (4, 256), dtype=jnp.float32)            # 2-D

    checks = [
        (x4, (0, 2, 3, 1)),      # NCHW -> NHWC: channels-last, batch-folded
        (x4, (1, 0, 2, 3)),      # leading-axes permute: pure DMA re-addressing
        (x4, (0, 1, 3, 2)),      # trailing transpose, batch folded into the block
        (x4, (1, 0, 3, 2)),      # trailing transpose with permuted leading axes
        (x5, (2, 0, 1, 3, 4)),   # 5-D leading permute, lane-dense (rows,128) tail
        (x5, (0, 2, 1, 3, 4)),   # 5-D leading permute with in-place batch folding
        (x5, (0, 1, 3, 4, 2)),   # NCDHW -> NDHWC
        (x2, (1, 0)),            # plain 2-D transpose
    ]
    for xin, dims in checks:
        out = jax.block_until_ready(Permute(dims)(xin))
        ref = jnp.transpose(xin, dims)
        assert out.shape == ref.shape, (dims, out.shape, ref.shape)
        assert out.dtype == ref.dtype, (dims, out.dtype, ref.dtype)
        assert bool(jnp.array_equal(out, ref)), f"mismatch vs jnp.transpose for dims={dims}"

    print("KERNEL_OK")
</pallas_src>

<mosaic_0001>
module attributes {stable_mosaic.version = 11 : i64} {
  func.func @kernel(%arg0: i32, %arg1: i32, %arg2: memref<1x4x256xf32, #tpu.memory_space<vmem>>, %arg3: memref<1x256x4xf32, #tpu.memory_space<vmem>>) attributes {dimension_semantics = [#tpu.dimension_semantics<parallel>, #tpu.dimension_semantics<parallel>], iteration_bounds = array<i64: 2, 1>, scalar_prefetch = 0 : i64, scratch_operands = 0 : i64, tpu.core_type = #tpu.core_type<tc>, window_params = [{transform_indices = @transform_0, window_bounds = array<i64: 1, 4, 256>}, {transform_indices = @transform_1, window_bounds = array<i64: 1, 256, 4>}]} {
    %c0 = arith.constant 0 : index
    %c0_0 = arith.constant 0 : index
    %c0_1 = arith.constant 0 : index
    %0 = vector.load %arg2[%c0, %c0_0, %c0_1] : memref<1x4x256xf32, #tpu.memory_space<vmem>>, vector<1x4x256xf32>
    %1 = vector.shape_cast %0 : vector<1x4x256xf32> to vector<4x256xf32>
    %2 = tpu.transpose %1, [1, 0] : vector<4x256xf32> -> vector<256x4xf32>
    %c0_2 = arith.constant 0 : index
    %c0_3 = arith.constant 0 : index
    %c0_4 = arith.constant 0 : index
    %3 = vector.load %arg3[%c0_2, %c0_3, %c0_4] : memref<1x256x4xf32, #tpu.memory_space<vmem>>, vector<1x256x4xf32>
    %4 = vector.shape_cast %3 : vector<1x256x4xf32> to vector<256x4xf32>
    %5 = vector.shape_cast %2 : vector<256x4xf32> to vector<1x256x4xf32>
    tpu.vector_store %arg3[%c0_2, %c0_3, %c0_4], %5 {strides = array<i32>} : memref<1x256x4xf32, #tpu.memory_space<vmem>>, vector<1x256x4xf32>,
    return
  }
  func.func @transform_0(%arg0: i32, %arg1: i32) -> (i32, i32, i32) {
    %c0_i32 = arith.constant 0 : i32
    %c0_i32_0 = arith.constant 0 : i32
    return %arg0, %c0_i32, %arg1 : i32, i32, i32
  }
  func.func @transform_1(%arg0: i32, %arg1: i32) -> (i32, i32, i32) {
    %c0_i32 = arith.constant 0 : i32
    %c0_i32_0 = arith.constant 0 : i32
    return %arg0, %arg1, %c0_i32 : i32, i32, i32
  }
}

</mosaic_0001>

<llo_original>
// kernel: tpu_custom_call.1
$region0: #{tpu_custom_call.1}
  #allocation0 [shape = 'u32[]', space=smem, size = 0x4, offset = 0x4, fixed_abs, tag = 'smem constant byte address 0x4 - core index']
  #allocation1 [shape = 'u32[144,128]{1,0:T(1,128)}', space=vmem, size = 0x12000, scoped, tag = 'internal scratch']
  %s0 = inlined_call_operand.hbm [shape: f32[2,4,256], index: 0, kind: input, shape index: {}]
  %s1 = inlined_call_operand.vmem [shape: f32[2,256,4], index: 1, kind: output, shape index: {}]
  %s2 = sld [smem:[#allocation0]]
  $region41: #{tpu_custom_call.1} parent=0
    _
  %s4 = ssub.s32 1, %s2
  %s5 = scalar_select 0, %s4, %s2
  $region1: #{tpu_custom_call.1} parent=0
    #allocation2 [shape = 'u8[8192]{0}', space=vmem, size = 0x2000, scoped, tag = 'input window, operand 0']
    #allocation3 [shape = 's32[2]{0}', space=sflag, size = 0x8, scoped, tag = 'scoped memory for tpu_custom_call.1']
    %6 = vsyncpa [#allocation3], 0
    %s7 = scalar_lea.sflag [#allocation3], 1
    %8 = vsyncpa %s7, 0
    loop: start=0, step=1, limit=4
    $region2: #{tpu_custom_call.1} parent=1 // loop_pre_header
      _
    $region3: #{tpu_custom_call.1} parent=1 // loop_header
      %s10 = sphi 0, %s14
      %p11 = scmp.ge.s32.totalorder %s10, 4
      %s17 = sphi 0, %s29
      %s18 = sphi 0, %s25
      %s19 = sphi 0, %s17
      %s20 = sphi 0, %s18
      %s21 = sphi 0, %s19
      %s22 = sphi 0, %s20
      %s34 = sphi 0, %s36
      %s37 = sphi 0, %s34
      %s38 = sphi 0, %s37
      %s54 = sphi 0, %s38
      %s62 = sphi 0, %s64
      %s65 = sphi 0, %s62
      %s66 = sphi 0, %s65
      %s82 = sphi 0, %s66
    $region4: #{tpu_custom_call.1} parent=1 // loop_header_branch
      %13 = sbr.rel (%p11) target = $region8
    $region5: #{tpu_custom_call.1} parent=1 // loop_body
      %s15 = ssub.s32 %s10, 1
      %s16 = ssub.s32 %s10, 2
      %s23 = sadd.s32 1, %s18
      %p24 = scmp.ge.s32.totalorder %s23, 1
      %s25 = scalar_select %p24, 0, %s23
      %s26 = sadd.s32 1, %s17
      %s27 = scalar_select %p24, %s26, %s17
      %p28 = scmp.ge.s32.totalorder %s27, 2
      %s29 = scalar_select %p28, 0, %s27
      %s30 = ssub.s32 %s17, %s29
      %s31 = ssub.s32 %s18, %s25
      %s32 = sor.u32 %s30, %s31
      %p33 = scmp.eq.s32.totalorder %s32, 0
      %s35 = sadd.s32 %s34, 1
      %s36 = scalar_select %p33, %s34, %s35
      %p39 = pneg %p33
      %p40 = scmp.eq.s32.totalorder %s10, 1
      %p41 = por %p39, %p40
      %p42 = scmp.ne.s32.totalorder %s34, %s37
      %p43 = scmp.eq.s32.totalorder %s10, 0
      %p44 = por %p42, %p43
      %p45 = scmp.ne.s32.totalorder %s34, %s37
      %p46 = scmp.eq.s32.totalorder %s15, 1
      %p47 = por %p45, %p46
      %p48 = scmp.ne.s32.totalorder %s37, %s38
      %p49 = scmp.eq.s32.totalorder %s15, 0
      %p50 = por %p48, %p49
      %p51 = scmp.ne.s32.totalorder %s37, %s38
      %p52 = scmp.eq.s32.totalorder %s16, 1
      %p53 = por %p51, %p52
      %p55 = scmp.ne.s32.totalorder %s38, %s54
      %p56 = scmp.eq.s32.totalorder %s16, 0
      %p57 = por %p55, %p56
      %s58 = ssub.s32 %s17, %s29
      %s59 = ssub.s32 %s18, %s25
      %s60 = sor.u32 %s58, %s59
      %p61 = scmp.eq.s32.totalorder %s60, 0
      %s63 = sadd.s32 %s62, 1
      %s64 = scalar_select %p61, %s62, %s63
      %p67 = pneg %p61
      %p68 = scmp.eq.s32.totalorder %s10, 1
      %p69 = por %p67, %p68
      %p70 = scmp.ne.s32.totalorder %s62, %s65
      %p71 = scmp.eq.s32.totalorder %s10, 0
      %p72 = por %p70, %p71
      %p73 = scmp.ne.s32.totalorder %s62, %s65
      %p74 = scmp.eq.s32.totalorder %s15, 1
      %p75 = por %p73, %p74
      %p76 = scmp.ne.s32.totalorder %s65, %s66
      %p77 = scmp.eq.s32.totalorder %s15, 0
      %p78 = por %p76, %p77
      %p79 = scmp.ne.s32.totalorder %s65, %s66
      %p80 = scmp.eq.s32.totalorder %s16, 1
      %p81 = por %p79, %p80
      %p83 = scmp.ne.s32.totalorder %s66, %s82
      %p84 = scmp.eq.s32.totalorder %s16, 0
      %p85 = por %p83, %p84
      %p86 = scmp.le.s32.totalorder 1, %s10
      %p87 = scmp.lt.s32.totalorder %s10, 3
      %p88 = pnand %p86, %p87
      %p89 = pneg %p88
      // Predicated region
      $region9: #{tpu_custom_call.1} parent=5 // pred_check
        _
      $region10: #{tpu_custom_call.1} parent=5 // pred_check_branch
        %91 = sbr.rel (%p88) target = $region12
      $region11: #{tpu_custom_call.1} parent=5 // pred_region
        %s92 = ssub.s32 %s10, 1
      $region12: #{tpu_custom_call.1} parent=5 // pred_fallthru
        _
      %p93 = scmp.lt.s32.totalorder %s10, 2
      // Predicated region
      $region13: #{tpu_custom_call.1} parent=5 // pred_check
        %p94 = pneg %p93
      $region14: #{tpu_custom_call.1} parent=5 // pred_check_branch
        %96 = sbr.rel (%p94) target = $region16
      $region15: #{tpu_custom_call.1} parent=5 // pred_region
        // Predicated region
        $region17: #{tpu_custom_call.1} parent=15 // pred_check
          %p97 = pneg %p44
        $region18: #{tpu_custom_call.1} parent=15 // pred_check_branch
          %99 = sbr.rel (%p97) target = $region20
        $region19: #{tpu_custom_call.1} parent=15 // pred_region
          %s100 = sand.u32 %s34, 1
          %s101 = scalar_lea.sflag [#allocation3], %s100
          %s102 = sand.u32 %s34, 1
          %s103 = smul.addr %s102, 8
          %s104 = scalar_lea.vmem [#allocation2], %s103
          %s105 = smul.u32 2, %s18
          %s107 = ssub.s32 128, 128
          %108 = vsyncadd %s101, %s107
          %s109 = smul.addr %s17, 2
          %s110 = sadd.s32 %s105, %s109
          %s111 = smul.addr %s110, 64
          %s112 = scalar_lea.hbm %s0, %s111
          %s114 = sshll.u32 %s104, 4
          %s115 = int_to_ptr.vmem [resolvable:$true] %s114
          %117 = dma.hbm_to_vmem [thread:$0]  %s112, 128, %s115, %s101
        $region20: #{tpu_custom_call.1} parent=15 // pred_fallthru
          _
      $region16: #{tpu_custom_call.1} parent=5 // pred_fallthru
        _
      %p118 = scmp.le.s32.totalorder 1, %s10
      %p119 = scmp.lt.s32.totalorder %s10, 3
      %p120 = pnand %p118, %p119
      %p121 = pneg %p120
      // Predicated region
      $region21: #{tpu_custom_call.1} parent=5 // pred_check
        _
      $region22: #{tpu_custom_call.1} parent=5 // pred_check_branch
        %123 = sbr.rel (%p120) target = $region24
      $region23: #{tpu_custom_call.1} parent=5 // pred_region
        %s124 = ssub.s32 %s10, 1
        %s125 = sand.u32 %s37, 1
        %s126 = scalar_lea.sflag [#allocation3], %s125
        %s127 = sand.u32 %s37, 1
        %s128 = smul.addr %s127, 8
        %s129 = scalar_lea.vmem [#allocation2], %s128
        // Predicated region
        $region25: #{tpu_custom_call.1} parent=23 // pred_check
          %p130 = pneg %p50
        $region26: #{tpu_custom_call.1} parent=23 // pred_check_branch
          %132 = sbr.rel (%p130) target = $region28
        $region27: #{tpu_custom_call.1} parent=23 // pred_region
          %133 = dma.done %s126, 128
        $region28: #{tpu_custom_call.1} parent=23 // pred_fallthru
          _
        %s134 = sand.u32 %s37, 1
        %s135 = scalar_lea.sflag [#allocation3], %s134
        %s136 = sand.u32 %s37, 1
        %s137 = smul.addr %s136, 8
        %s138 = scalar_lea.vmem [#allocation2], %s137
        %p139 = pneg %p50
        %p140 = pneg %p47
        %p141 = pneg %p78
        %p142 = pneg %p75
        %s143 = smul.u32 32, %s20
        %p144 = scmp.lt.s32.totalorder %s19, 1
        %s145 = scalar_select %p144, %s19, 1
        %p146 = scmp.lt.s32.totalorder %s143, 31
        %s147 = scalar_select %p146, %s143, 31
        %s148 = smul.addr %s145, 32
        %s149 = sadd.s32 %s147, %s148
        %s150 = smul.addr %s149, 8
        %s151 = scalar_lea.vmem %s1, %s150
        %s152 = smul.u32 2, %s20
        %s153 = smul.u32 32, %s20
        %p154 = scmp.lt.s32.totalorder %s19, 1
        %s155 = scalar_select %p154, %s19, 1
        %p156 = scmp.lt.s32.totalorder %s153, 31
        %s157 = scalar_select %p156, %s153, 31
        %s158 = smul.addr %s155, 32
        %s159 = sadd.s32 %s157, %s158
        %s160 = smul.addr %s159, 8
        %s161 = scalar_lea.vmem %s1, %s160
        %s162 = smul.u32 32, %s20
        %v163 = vld [vmem:[%s129] sm:$0xff]
        %v165 = vcombine.high %v163, %v163
        %167 = vxpose.xlu0.b32.start [1/16] %v163, 128
        %168 = vxpose.xlu0.b32.cont [2/16] 0.0, 128
        %169 = vxpose.xlu0.b32.cont [3/16] 0.0, 128
        %170 = vxpose.xlu0.b32.cont [4/16] 0.0, 128
        %171 = vxpose.xlu0.b32.cont [5/16] 0.0, 128
        %172 = vxpose.xlu0.b32.cont [6/16] 0.0, 128
        %173 = vxpose.xlu0.b32.cont [7/16] 0.0, 128
        %174 = vxpose.xlu0.b32.cont [8/16] 0.0, 128
        %175 = vxpose.xlu0.b32.cont [9/16] 0.0, 128
        %176 = vxpose.xlu0.b32.cont [10/16] 0.0, 128
        %177 = vxpose.xlu0.b32.cont [11/16] 0.0, 128
        %178 = vxpose.xlu0.b32.cont [12/16] 0.0, 128
        %179 = vxpose.xlu0.b32.cont [13/16] 0.0, 128
        %180 = vxpose.xlu0.b32.cont [14/16] 0.0, 128
        %181 = vxpose.xlu0.b32.cont [15/16] 0.0, 128
        %182 = vxpose.xlu0.b32.end [16/16] 0.0, 128
        %v183 = vpop.trf.xlu0
        %v184 = vpop.trf.xlu0
        %v185 = vpop.trf.xlu0
        %v186 = vpop.trf.xlu0
        %v187 = vpop.trf.xlu0
        %v188 = vpop.trf.xlu0
        %v189 = vpop.trf.xlu0
        %v190 = vpop.trf.xlu0
        %v191 = vpop.trf.xlu0
        %v192 = vpop.trf.xlu0
        %v193 = vpop.trf.xlu0
        %v194 = vpop.trf.xlu0
        %v195 = vpop.trf.xlu0
        %v196 = vpop.trf.xlu0
        %v197 = vpop.trf.xlu0
        %v198 = vpop.trf.xlu0
        %199 = vxpose.xlu0.b32.start [1/16] %v165, 128
        %200 = vxpose.xlu0.b32.cont [2/16] 0.0, 128
        %201 = vxpose.xlu0.b32.cont [3/16] 0.0, 128
        %202 = vxpose.xlu0.b32.cont [4/16] 0.0, 128
        %203 = vxpose.xlu0.b32.cont [5/16] 0.0, 128
        %204 = vxpose.xlu0.b32.cont [6/16] 0.0, 128
        %205 = vxpose.xlu0.b32.cont [7/16] 0.0, 128
        %206 = vxpose.xlu0.b32.cont [8/16] 0.0, 128
        %207 = vxpose.xlu0.b32.cont [9/16] 0.0, 128
        %208 = vxpose.xlu0.b32.cont [10/16] 0.0, 128
        %209 = vxpose.xlu0.b32.cont [11/16] 0.0, 128
        %210 = vxpose.xlu0.b32.cont [12/16] 0.0, 128
        %211 = vxpose.xlu0.b32.cont [13/16] 0.0, 128
        %212 = vxpose.xlu0.b32.cont [14/16] 0.0, 128
        %213 = vxpose.xlu0.b32.cont [15/16] 0.0, 128
        %214 = vxpose.xlu0.b32.end [16/16] 0.0, 128
        %v215 = vpop.trf.xlu0
        %v216 = vpop.trf.xlu0
        %v217 = vpop.trf.xlu0
        %v218 = vpop.trf.xlu0
        %v219 = vpop.trf.xlu0
        %v220 = vpop.trf.xlu0
        %v221 = vpop.trf.xlu0
        %v222 = vpop.trf.xlu0
        %v223 = vpop.trf.xlu0
        %v224 = vpop.trf.xlu0
        %v225 = vpop.trf.xlu0
        %v226 = vpop.trf.xlu0
        %v227 = vpop.trf.xlu0
        %v228 = vpop.trf.xlu0
        %v229 = vpop.trf.xlu0
        %v230 = vpop.trf.xlu0
        %vm231 = vcmask 31744
        %232 = vst.msk [vmem:[%s161] sm:$0xff] %vm231, %v183
        %233 = vst.msk [vmem:[%s161 + $0x8] sm:$0xff] %vm231, %v184
        %234 = vst.msk [vmem:[%s161 + $0x10] sm:$0xff] %vm231, %v185
        %235 = vst.msk [vmem:[%s161 + $0x18] sm:$0xff] %vm231, %v186
        %236 = vst.msk [vmem:[%s161 + $0x20] sm:$0xff] %vm231, %v187
        %237 = vst.msk [vmem:[%s161 + $0x28] sm:$0xff] %vm231, %v188
        %238 = vst.msk [vmem:[%s161 + $0x30] sm:$0xff] %vm231, %v189
        %239 = vst.msk [vmem:[%s161 + $0x38] sm:$0xff] %vm231, %v190
        %240 = vst.msk [vmem:[%s161 + $0x40] sm:$0xff] %vm231, %v191
        %241 = vst.msk [vmem:[%s161 + $0x48] sm:$0xff] %vm231, %v192
        %242 = vst.msk [vmem:[%s161 + $0x50] sm:$0xff] %vm231, %v193
        %243 = vst.msk [vmem:[%s161 + $0x58] sm:$0xff] %vm231, %v194
        %244 = vst.msk [vmem:[%s161 + $0x60] sm:$0xff] %vm231, %v195
        %245 = vst.msk [vmem:[%s161 + $0x68] sm:$0xff] %vm231, %v196
        %246 = vst.msk [vmem:[%s161 + $0x70] sm:$0xff] %vm231, %v197
        %247 = vst.msk [vmem:[%s161 + $0x78] sm:$0xff] %vm231, %v198
        %248 = vst.msk [vmem:[%s161 + $0x80] sm:$0xff] %vm231, %v215
        %249 = vst.msk [vmem:[%s161 + $0x88] sm:$0xff] %vm231, %v216
        %250 = vst.msk [vmem:[%s161 + $0x90] sm:$0xff] %vm231, %v217
        %251 = vst.msk [vmem:[%s161 + $0x98] sm:$0xff] %vm231, %v218
        %252 = vst.msk [vmem:[%s161 + $0xa0] sm:$0xff] %vm231, %v219
        %253 = vst.msk [vmem:[%s161 + $0xa8] sm:$0xff] %vm231, %v220
        %254 = vst.msk [vmem:[%s161 + $0xb0] sm:$0xff] %vm231, %v221
        %255 = vst.msk [vmem:[%s161 + $0xb8] sm:$0xff] %vm231, %v222
        %256 = vst.msk [vmem:[%s161 + $0xc0] sm:$0xff] %vm231, %v223
        %257 = vst.msk [vmem:[%s161 + $0xc8] sm:$0xff] %vm231, %v224
        %258 = vst.msk [vmem:[%s161 + $0xd0] sm:$0xff] %vm231, %v225
        %259 = vst.msk [vmem:[%s161 + $0xd8] sm:$0xff] %vm231, %v226
        %260 = vst.msk [vmem:[%s161 + $0xe0] sm:$0xff] %vm231, %v227
        %261 = vst.msk [vmem:[%s161 + $0xe8] sm:$0xff] %vm231, %v228
        %262 = vst.msk [vmem:[%s161 + $0xf0] sm:$0xff] %vm231, %v229
        %263 = vst.msk [vmem:[%s161 + $0xf8] sm:$0xff] %vm231, %v230
        %s264 = smul.u32 32, %s20
        %p265 = scmp.lt.s32.totalorder %s19, 1
        %s266 = scalar_select %p265, %s19, 1
        %p267 = scmp.lt.s32.totalorder %s264, 31
        %s268 = scalar_select %p267, %s264, 31
        %s269 = smul.addr %s266, 32
        %s270 = sadd.s32 %s268, %s269
        %s271 = smul.addr %s270, 8
        %s272 = scalar_lea.vmem %s1, %s271
        // Predicated region
        $region29: #{tpu_custom_call.1} parent=23 // pred_check
          %p273 = pneg %p75
        $region30: #{tpu_custom_call.1} parent=23 // pred_check_branch
          %275 = sbr.rel (%p273) target = $region32
        $region31: #{tpu_custom_call.1} parent=23 // pred_region
          %s276 = smul.u32 32, %s20
        $region32: #{tpu_custom_call.1} parent=23 // pred_fallthru
          _
      $region24: #{tpu_custom_call.1} parent=5 // pred_fallthru
        _
      %p277 = scmp.le.s32.totalorder 2, %s10
      // Predicated region
      $region33: #{tpu_custom_call.1} parent=5 // pred_check
        %p278 = pneg %p277
      $region34: #{tpu_custom_call.1} parent=5 // pred_check_branch
        %280 = sbr.rel (%p278) target = $region36
      $region35: #{tpu_custom_call.1} parent=5 // pred_region
        %s281 = ssub.s32 %s10, 2
        // Predicated region
        $region37: #{tpu_custom_call.1} parent=35 // pred_check
          %p282 = pneg %p81
        $region38: #{tpu_custom_call.1} parent=35 // pred_check_branch
          %284 = sbr.rel (%p282) target = $region40
        $region39: #{tpu_custom_call.1} parent=35 // pred_region
          %s285 = smul.u32 32, %s22
          %p286 = scmp.lt.s32.totalorder %s21, 1
          %s287 = scalar_select %p286, %s21, 1
          %p288 = scmp.lt.s32.totalorder %s285, 31
          %s289 = scalar_select %p288, %s285, 31
          %s290 = smul.addr %s287, 32
          %s291 = sadd.s32 %s289, %s290
          %s292 = smul.addr %s291, 8
          %s293 = scalar_lea.vmem %s1, %s292
        $region40: #{tpu_custom_call.1} parent=35 // pred_fallthru
          _
      $region36: #{tpu_custom_call.1} parent=5 // pred_fallthru
        _
    $region6: #{tpu_custom_call.1} parent=1 // loop_footer
      %s14 = sadd.s32 1, %s10
    $region7: #{tpu_custom_call.1} parent=1 // loop_footer_branch
      %9 = sbr.rel target = $region3
    $region8: #{tpu_custom_call.1} parent=1 // loop_exit
      _
    %294 = vsyncpa [#allocation3], 1
    %s295 = scalar_lea.sflag [#allocation3], 1
    %296 = vsyncpa %s295, 1

</llo_original>
